<compile_context>
chip_gen: v6e
topology: v6e:2x2x1
jax: 0.10.0
libtpu: 0.0.40
codegen_flags: <defaults>
</compile_context>

<pallas_src>
import jax
import jax.numpy as jnp
from jax.experimental import pallas as pl
from jax.experimental.pallas import tpu as pltpu


def conv3d_relu_kernel(x_ref, w_ref, b_ref, o_ref):
    """Stencil-transposed 3x3x3 conv + bias + ReLU.

    x_ref : (Ts, K9pad, Lp) bf16   input depth slices of this tile (padded-depth index t*Ts + j)
    w_ref : (3*Cout, K9pad) bf16
    b_ref : (Cout, 1) f32
    o_ref : (D, Cout, Lp) f32      resident accumulator across the depth-tile grid axis
    """
    Ts = x_ref.shape[0]
    D, Cout, Lp = o_ref.shape
    t = pl.program_id(1)
    n_tiles = pl.num_programs(1)

    # First tile for this batch: seed the whole output block with the bias.
    @pl.when(t == 0)
    def _init():
        o_ref[...] = jnp.broadcast_to(b_ref[...], o_ref.shape)

    base = t * Ts  # padded-depth index of the first slice in this tile
    for j in range(Ts):  # static unroll (short, fixed trip count)
        # One MXU dispatch per input slice: (3*Cout, K) x (K, Lp) with f32 accumulation.
        y = jnp.dot(w_ref[...], x_ref[j], preferred_element_type=jnp.float32)
        di = base + j
        # Input slice di contributes W[kd] to output depth do = di - kd.
        for kd in range(3):
            do = di - kd

            @pl.when(jnp.logical_and(do >= 0, do < D))
            def _acc(do=do, kd=kd, y=y):
                o_ref[do] += y[kd * Cout:(kd + 1) * Cout]

    # Last tile: all contributions are in; apply ReLU in place before HBM writeback.
    @pl.when(t == n_tiles - 1)
    def _relu():
        o_ref[...] = jnp.maximum(o_ref[...], 0.0)


def conv3d_relu_pallas(xk, w_slab, b_col, Ts):
    """xk: (N, D+2, K9pad, Lp) bf16; w_slab: (3*Cout, K9pad) bf16; b_col: (Cout, 1) f32."""
    N, Dp, K9pad, Lp = xk.shape
    D = Dp - 2
    assert Dp % Ts == 0
    nT = Dp // Ts
    Cout = b_col.shape[0]

    # VMEM budget: double-buffered x tiles + double-buffered resident output block + weights.
    x_block = Ts * K9pad * Lp * 2
    o_block = D * Cout * Lp * 4
    w_bytes = 3 * Cout * K9pad * 2 + Cout * 128 * 4
    vmem_need = 2 * x_block + 2 * o_block + w_bytes
    vmem_limit = int(min(max(4 * vmem_need, 16 * 1024 * 1024), 32 * 1024 * 1024))

    return pl.pallas_call(
        conv3d_relu_kernel,
        out_shape=jax.ShapeDtypeStruct((N, D, Cout, Lp), jnp.float32),
        grid=(N, nT),
        in_specs=[
            pl.BlockSpec((None, Ts, K9pad, Lp), lambda n, t: (n, t, 0, 0)),  # disjoint slice tiles
            pl.BlockSpec((3 * Cout, K9pad), lambda n, t: (0, 0)),            # weight slab, resident
            pl.BlockSpec((Cout, 1), lambda n, t: (0, 0)),                    # bias, resident
        ],
        out_specs=pl.BlockSpec((None, D, Cout, Lp), lambda n, t: (n, 0, 0, 0)),  # accumulator
        compiler_params=pltpu.CompilerParams(
            dimension_semantics=("parallel", "arbitrary"),
            vmem_limit_bytes=vmem_limit),
    )(xk, w_slab, b_col)


def _pick_depth_tile(dp, min_tiles=4):
    """Largest divisor Ts of dp that still gives >= min_tiles grid steps (else 1)."""
    best = 1
    for ts in range(1, dp + 1):
        if dp % ts == 0 and dp // ts >= min_tiles:
            best = ts
    return best


def im2col_hw(x_ndhwc, Lp, K9pad):
    """Zero-pad D/H/W by 1, flatten H/W to the lane axis, fold the 3x3 (kh,kw) window into K.

    Returns (N, D+2, K9pad, Lp) bf16.  K index k = (kh*3 + kw)*Cin + c (zero rows above 9*Cin);
    lane index l = h*Wp + w on the padded (Hp, Wp) grid, zero lanes above Hp*Wp.
    """
    N, D, H, W, Cin = x_ndhwc.shape
    Hp, Wp = H + 2, W + 2
    L = Hp * Wp
    P = Wp + 1  # halo so every tap slice below is in-bounds (wraps only feed cropped halo lanes)
    xp = jnp.pad(x_ndhwc, ((0, 0), (1, 1), (1, 1), (1, 1), (0, 0)))  # conv padding = 1
    xf = xp.reshape(N, D + 2, L, Cin)
    xh = jnp.pad(xf, ((0, 0), (0, 0), (P, P), (0, 0)))
    taps = []
    for kh in range(3):
        for kw in range(3):
            s = P + (kh - 1) * Wp + (kw - 1)
            taps.append(xh[:, :, s:s + L, :])
    xk = jnp.concatenate(taps, axis=-1)                                    # (N, D+2, L, 9*Cin)
    xk = jnp.pad(xk, ((0, 0), (0, 0), (0, Lp - L), (0, K9pad - 9 * Cin)))  # lane + K padding
    xk = jnp.transpose(xk, (0, 1, 3, 2)).astype(jnp.bfloat16)              # (N, D+2, K9pad, Lp)
    return xk


def pack_conv_params(w_oidhw, bias, K9pad):
    """Conv3d weight (Cout, Cin, 3, 3, 3) -> (3*Cout, K9pad) bf16 slab; bias -> (Cout, 1) f32.

    Slab row r = kd*Cout + o; column k = (kh*3 + kw)*Cin + c, zero-padded up to K9pad.
    """
    Cout, Cin = w_oidhw.shape[0], w_oidhw.shape[1]
    w = jnp.transpose(w_oidhw, (2, 3, 4, 1, 0))          # (kd, kh, kw, Cin, Cout)
    w = w.reshape(3, 9 * Cin, Cout)                      # K index = (kh*3 + kw)*Cin + c
    w = jnp.pad(w, ((0, 0), (0, K9pad - 9 * Cin), (0, 0)))
    w = jnp.transpose(w, (0, 2, 1)).reshape(3 * Cout, K9pad).astype(jnp.bfloat16)
    b_col = bias.reshape(Cout, 1).astype(jnp.float32)
    return w, b_col


def upsample_trilinear_x2_align_corners(x):
    """nn.Upsample(scale_factor=2, mode='trilinear', align_corners=True).  x: (N, C, D, H, W)."""
    def interp_axis(a, axis):
        in_size = a.shape[axis]
        out_size = 2 * in_size
        if in_size == 1:
            return jnp.repeat(a, out_size, axis=axis)
        pos = jnp.arange(out_size, dtype=jnp.float32) * (in_size - 1) / (out_size - 1)
        lo = jnp.floor(pos).astype(jnp.int32)
        hi = jnp.minimum(lo + 1, in_size - 1)
        frac = pos - lo.astype(jnp.float32)
        alo = jnp.take(a, lo, axis=axis)
        ahi = jnp.take(a, hi, axis=axis)
        shape = [1] * a.ndim
        shape[axis] = out_size
        frac = frac.reshape(shape)
        return alo * (1.0 - frac) + ahi * frac

    for ax in (2, 3, 4):
        x = interp_axis(x, ax)
    return x


def single_up_forward(x1, x2, w_oidhw, bias):
    """SingleUp.forward.  x1, x2: NCDHW float32.  Returns NCDHW float32."""
    x1u = upsample_trilinear_x2_align_corners(x1)
    # Reproduce the module's F.pad argument mapping exactly (diffX pads W, diffY pads H, diffZ pads D,
    # with the diffs computed from the module's quirky axis choices).
    diffY = x2.shape[2] - x1u.shape[2]
    diffX = x2.shape[3] - x1u.shape[3]
    diffZ = x2.shape[4] - x1u.shape[4]
    x1u = jnp.pad(x1u, ((0, 0), (0, 0),
                        (diffZ // 2, diffZ - diffZ // 2),
                        (diffY // 2, diffY - diffY // 2),
                        (diffX // 2, diffX - diffX // 2)))
    x = jnp.concatenate([x2, x1u], axis=1)           # NCDHW
    x_ndhwc = jnp.transpose(x, (0, 2, 3, 4, 1))      # (N, D, H, W, Cin)
    N, D, H, W, Cin = x_ndhwc.shape
    Cout = w_oidhw.shape[0]

    Hp, Wp = H + 2, W + 2
    L = Hp * Wp
    Lp = ((L + 127) // 128) * 128                    # lane-dense output (324 -> 384)
    K9pad = max(128, ((9 * Cin + 15) // 16) * 16)    # clean bf16 K tiles (108 -> 128)
    Ts = _pick_depth_tile(D + 2)                     # disjoint input-slice tiles per grid step

    xk = im2col_hw(x_ndhwc, Lp, K9pad)
    w_slab, b_col = pack_conv_params(w_oidhw, bias, K9pad)
    y = conv3d_relu_pallas(xk, w_slab, b_col, Ts)    # (N, D, Cout, Lp)
    y = y[..., :L].reshape(N, D, Cout, Hp, Wp)[:, :, :, 1:H + 1, 1:W + 1]
    return jnp.transpose(y, (0, 2, 1, 3, 4))         # back to NCDHW


if __name__ == "__main__":
    key = jax.random.PRNGKey(0)
    k1, k2, kw, kb = jax.random.split(key, 4)

    N = 2
    C1, C2 = 8, 4           # x1 channels (upsampled branch), x2 channels (skip connection)
    Cin = C1 + C2           # conv in_channels
    Cout = 8                # conv out_channels
    D1, H1, W1 = 4, 8, 8
    x1 = jax.random.normal(k1, (N, C1, D1, H1, W1), jnp.float32)
    x2 = jax.random.normal(k2, (N, C2, 2 * D1, 2 * H1, 2 * W1), jnp.float32)

    # Conv3d(Cin, Cout, kernel_size=3, padding=1) parameters, deterministic init.
    w_oidhw = jax.random.normal(kw, (Cout, Cin, 3, 3, 3), jnp.float32) * 0.1
    bias = jax.random.normal(kb, (Cout,), jnp.float32) * 0.1

    fwd = jax.jit(single_up_forward)
    y = fwd(x1, x2, w_oidhw, bias)
    y = jax.block_until_ready(y)

    # Reference: same upsample/pad/concat glue, conv via lax.conv_general_dilated + ReLU (f32).
    x1u = upsample_trilinear_x2_align_corners(x1)
    xcat = jnp.concatenate([x2, x1u], axis=1)
    ref = jax.lax.conv_general_dilated(
        xcat, w_oidhw, window_strides=(1, 1, 1), padding=[(1, 1)] * 3,
        dimension_numbers=("NCDHW", "OIDHW", "NCDHW"),
        precision=jax.lax.Precision.HIGHEST)
    ref = jnp.maximum(ref + bias.reshape(1, Cout, 1, 1, 1), 0.0)

    assert y.shape == ref.shape == (N, Cout, 2 * D1, 2 * H1, 2 * W1)
    # bf16 matmul operands with f32 accumulation -> slightly relaxed tolerance vs the f32 reference.
    assert bool(jnp.allclose(y, ref, rtol=2e-2, atol=2e-2))
    print("KERNEL_OK")
</pallas_src>

<mosaic_0001>
module attributes {stable_mosaic.version = 11 : i64} {
  func.func @conv3d_relu_kernel(%arg0: i32, %arg1: i32, %arg2: memref<1x2x128x384xbf16, #tpu.memory_space<vmem>>, %arg3: memref<24x128xbf16, #tpu.memory_space<vmem>>, %arg4: memref<8x1xf32, #tpu.memory_space<vmem>>, %arg5: memref<1x8x8x384xf32, #tpu.memory_space<vmem>>) attributes {dimension_semantics = [#tpu.dimension_semantics<parallel>, #tpu.dimension_semantics<arbitrary>], iteration_bounds = array<i64: 2, 5>, scalar_prefetch = 0 : i64, scratch_operands = 0 : i64, tpu.core_type = #tpu.core_type<tc>, window_params = [{transform_indices = @transform_0, window_bounds = array<i64: 1, 2, 128, 384>}, {pipeline_mode = #tpu.pipeline_mode<synchronous>, transform_indices = @transform_1, window_bounds = array<i64: 24, 128>}, {pipeline_mode = #tpu.pipeline_mode<synchronous>, transform_indices = @transform_2, window_bounds = array<i64: 8, 1>}, {transform_indices = @transform_3, window_bounds = array<i64: 1, 8, 8, 384>}]} {
    %c0_i32 = arith.constant 0 : i32
    %0 = arith.cmpi eq, %arg1, %c0_i32 : i32
    %1 = arith.extui %0 : i1 to i32
    %c0_i32_0 = arith.constant 0 : i32
    %2 = arith.cmpi ne, %1, %c0_i32_0 : i32
    scf.if %2 {
      %c0_37 = arith.constant 0 : index
      %c0_38 = arith.constant 0 : index
      %53 = vector.load %arg4[%c0_37, %c0_38] : memref<8x1xf32, #tpu.memory_space<vmem>>, vector<8x1xf32>
      %54 = vector.shape_cast %53 : vector<8x1xf32> to vector<1x8x1xf32>
      %55 = vector.broadcast %54 : vector<1x8x1xf32> to vector<8x8x384xf32>
      %c0_39 = arith.constant 0 : index
      %c0_40 = arith.constant 0 : index
      %c0_41 = arith.constant 0 : index
      %c0_42 = arith.constant 0 : index
      %56 = vector.load %arg5[%c0_39, %c0_40, %c0_41, %c0_42] : memref<1x8x8x384xf32, #tpu.memory_space<vmem>>, vector<1x8x8x384xf32>
      %57 = vector.shape_cast %56 : vector<1x8x8x384xf32> to vector<8x8x384xf32>
      %58 = vector.shape_cast %55 : vector<8x8x384xf32> to vector<1x8x8x384xf32>
      tpu.vector_store %arg5[%c0_39, %c0_40, %c0_41, %c0_42], %58 {strides = array<i32>} : memref<1x8x8x384xf32, #tpu.memory_space<vmem>>, vector<1x8x8x384xf32>,
    } else {
    }
    %c2_i32 = arith.constant 2 : i32
    %3 = arith.muli %arg1, %c2_i32 : i32
    %c0 = arith.constant 0 : index
    %c0_1 = arith.constant 0 : index
    %4 = vector.load %arg3[%c0, %c0_1] : memref<24x128xbf16, #tpu.memory_space<vmem>>, vector<24x128xbf16>
    %c0_2 = arith.constant 0 : index
    %c0_3 = arith.constant 0 : index
    %c0_4 = arith.constant 0 : index
    %c0_5 = arith.constant 0 : index
    %5 = vector.load %arg2[%c0_2, %c0_3, %c0_4, %c0_5] : memref<1x2x128x384xbf16, #tpu.memory_space<vmem>>, vector<1x1x128x384xbf16>
    %6 = vector.shape_cast %5 : vector<1x1x128x384xbf16> to vector<128x384xbf16>
    %cst = arith.constant dense<0.000000e+00> : vector<24x384xf32>
    %7 = tpu.matmul %4, %6, %cst {dimension_numbers = #tpu.dot_dimension_numbers<[1], [0], [0], [1], [0, 0, 1, 1], [], []>} : vector<24x128xbf16>, vector<128x384xbf16>, vector<24x384xf32> -> vector<24x384xf32>
    %c0_i32_6 = arith.constant 0 : i32
    %8 = arith.addi %3, %c0_i32_6 : i32
    %c0_i32_7 = arith.constant 0 : i32
    %9 = arith.subi %8, %c0_i32_7 : i32
    %c0_i32_8 = arith.constant 0 : i32
    %10 = arith.cmpi sge, %9, %c0_i32_8 : i32
    %c8_i32 = arith.constant 8 : i32
    %11 = arith.cmpi slt, %9, %c8_i32 : i32
    %12 = arith.andi %10, %11 : i1
    %13 = arith.extui %12 : i1 to i32
    %c0_i32_9 = arith.constant 0 : i32
    %14 = arith.cmpi ne, %13, %c0_i32_9 : i32
    scf.if %14 {
      %c0_37 = arith.constant 0 : index
      %53 = arith.index_cast %9 : i32 to index
      %c0_38 = arith.constant 0 : index
      %c0_39 = arith.constant 0 : index
      %54 = vector.load %arg5[%c0_37, %53, %c0_38, %c0_39] : memref<1x8x8x384xf32, #tpu.memory_space<vmem>>, vector<1x1x8x384xf32>
      %55 = vector.shape_cast %54 : vector<1x1x8x384xf32> to vector<8x384xf32>
      %56 = vector.extract_strided_slice %7 {offsets = [0, 0], sizes = [8, 384], strides = [1, 1]} : vector<24x384xf32> to vector<8x384xf32>
      %57 = arith.addf %55, %56 : vector<8x384xf32>
      %c0_40 = arith.constant 0 : index
      %58 = arith.index_cast %9 : i32 to index
      %c0_41 = arith.constant 0 : index
      %c0_42 = arith.constant 0 : index
      %59 = vector.load %arg5[%c0_40, %58, %c0_41, %c0_42] : memref<1x8x8x384xf32, #tpu.memory_space<vmem>>, vector<1x1x8x384xf32>
      %60 = vector.shape_cast %59 : vector<1x1x8x384xf32> to vector<8x384xf32>
      %61 = vector.shape_cast %57 : vector<8x384xf32> to vector<1x1x8x384xf32>
      tpu.vector_store %arg5[%c0_40, %58, %c0_41, %c0_42], %61 {strides = array<i32>} : memref<1x8x8x384xf32, #tpu.memory_space<vmem>>, vector<1x1x8x384xf32>,
    } else {
    }
    %c1_i32 = arith.constant 1 : i32
    %15 = arith.subi %8, %c1_i32 : i32
    %c0_i32_10 = arith.constant 0 : i32
    %16 = arith.cmpi sge, %15, %c0_i32_10 : i32
    %c8_i32_11 = arith.constant 8 : i32
    %17 = arith.cmpi slt, %15, %c8_i32_11 : i32
    %18 = arith.andi %16, %17 : i1
    %19 = arith.extui %18 : i1 to i32
    %c0_i32_12 = arith.constant 0 : i32
    %20 = arith.cmpi ne, %19, %c0_i32_12 : i32
    scf.if %20 {
      %c0_37 = arith.constant 0 : index
      %53 = arith.index_cast %15 : i32 to index
      %c0_38 = arith.constant 0 : index
      %c0_39 = arith.constant 0 : index
      %54 = vector.load %arg5[%c0_37, %53, %c0_38, %c0_39] : memref<1x8x8x384xf32, #tpu.memory_space<vmem>>, vector<1x1x8x384xf32>
      %55 = vector.shape_cast %54 : vector<1x1x8x384xf32> to vector<8x384xf32>
      %56 = vector.extract_strided_slice %7 {offsets = [8, 0], sizes = [8, 384], strides = [1, 1]} : vector<24x384xf32> to vector<8x384xf32>
      %57 = arith.addf %55, %56 : vector<8x384xf32>
      %c0_40 = arith.constant 0 : index
      %58 = arith.index_cast %15 : i32 to index
      %c0_41 = arith.constant 0 : index
      %c0_42 = arith.constant 0 : index
      %59 = vector.load %arg5[%c0_40, %58, %c0_41, %c0_42] : memref<1x8x8x384xf32, #tpu.memory_space<vmem>>, vector<1x1x8x384xf32>
      %60 = vector.shape_cast %59 : vector<1x1x8x384xf32> to vector<8x384xf32>
      %61 = vector.shape_cast %57 : vector<8x384xf32> to vector<1x1x8x384xf32>
      tpu.vector_store %arg5[%c0_40, %58, %c0_41, %c0_42], %61 {strides = array<i32>} : memref<1x8x8x384xf32, #tpu.memory_space<vmem>>, vector<1x1x8x384xf32>,
    } else {
    }
    %c2_i32_13 = arith.constant 2 : i32
    %21 = arith.subi %8, %c2_i32_13 : i32
    %c0_i32_14 = arith.constant 0 : i32
    %22 = arith.cmpi sge, %21, %c0_i32_14 : i32
    %c8_i32_15 = arith.constant 8 : i32
    %23 = arith.cmpi slt, %21, %c8_i32_15 : i32
    %24 = arith.andi %22, %23 : i1
    %25 = arith.extui %24 : i1 to i32
    %c0_i32_16 = arith.constant 0 : i32
    %26 = arith.cmpi ne, %25, %c0_i32_16 : i32
    scf.if %26 {
      %c0_37 = arith.constant 0 : index
      %53 = arith.index_cast %21 : i32 to index
      %c0_38 = arith.constant 0 : index
      %c0_39 = arith.constant 0 : index
      %54 = vector.load %arg5[%c0_37, %53, %c0_38, %c0_39] : memref<1x8x8x384xf32, #tpu.memory_space<vmem>>, vector<1x1x8x384xf32>
      %55 = vector.shape_cast %54 : vector<1x1x8x384xf32> to vector<8x384xf32>
      %56 = vector.extract_strided_slice %7 {offsets = [16, 0], sizes = [8, 384], strides = [1, 1]} : vector<24x384xf32> to vector<8x384xf32>
      %57 = arith.addf %55, %56 : vector<8x384xf32>
      %c0_40 = arith.constant 0 : index
      %58 = arith.index_cast %21 : i32 to index
      %c0_41 = arith.constant 0 : index
      %c0_42 = arith.constant 0 : index
      %59 = vector.load %arg5[%c0_40, %58, %c0_41, %c0_42] : memref<1x8x8x384xf32, #tpu.memory_space<vmem>>, vector<1x1x8x384xf32>
      %60 = vector.shape_cast %59 : vector<1x1x8x384xf32> to vector<8x384xf32>
      %61 = vector.shape_cast %57 : vector<8x384xf32> to vector<1x1x8x384xf32>
      tpu.vector_store %arg5[%c0_40, %58, %c0_41, %c0_42], %61 {strides = array<i32>} : memref<1x8x8x384xf32, #tpu.memory_space<vmem>>, vector<1x1x8x384xf32>,
    } else {
    }
    %c0_17 = arith.constant 0 : index
    %c0_18 = arith.constant 0 : index
    %27 = vector.load %arg3[%c0_17, %c0_18] : memref<24x128xbf16, #tpu.memory_space<vmem>>, vector<24x128xbf16>
    %c0_19 = arith.constant 0 : index
    %c1 = arith.constant 1 : index
    %c0_20 = arith.constant 0 : index
    %c0_21 = arith.constant 0 : index
    %28 = vector.load %arg2[%c0_19, %c1, %c0_20, %c0_21] : memref<1x2x128x384xbf16, #tpu.memory_space<vmem>>, vector<1x1x128x384xbf16>
    %29 = vector.shape_cast %28 : vector<1x1x128x384xbf16> to vector<128x384xbf16>
    %cst_22 = arith.constant dense<0.000000e+00> : vector<24x384xf32>
    %30 = tpu.matmul %27, %29, %cst_22 {dimension_numbers = #tpu.dot_dimension_numbers<[1], [0], [0], [1], [0, 0, 1, 1], [], []>} : vector<24x128xbf16>, vector<128x384xbf16>, vector<24x384xf32> -> vector<24x384xf32>
    %c1_i32_23 = arith.constant 1 : i32
    %31 = arith.addi %3, %c1_i32_23 : i32
    %c0_i32_24 = arith.constant 0 : i32
    %32 = arith.subi %31, %c0_i32_24 : i32
    %c0_i32_25 = arith.constant 0 : i32
    %33 = arith.cmpi sge, %32, %c0_i32_25 : i32
    %c8_i32_26 = arith.constant 8 : i32
    %34 = arith.cmpi slt, %32, %c8_i32_26 : i32
    %35 = arith.andi %33, %34 : i1
    %36 = arith.extui %35 : i1 to i32
    %c0_i32_27 = arith.constant 0 : i32
    %37 = arith.cmpi ne, %36, %c0_i32_27 : i32
    scf.if %37 {
      %c0_37 = arith.constant 0 : index
      %53 = arith.index_cast %32 : i32 to index
      %c0_38 = arith.constant 0 : index
      %c0_39 = arith.constant 0 : index
      %54 = vector.load %arg5[%c0_37, %53, %c0_38, %c0_39] : memref<1x8x8x384xf32, #tpu.memory_space<vmem>>, vector<1x1x8x384xf32>
      %55 = vector.shape_cast %54 : vector<1x1x8x384xf32> to vector<8x384xf32>
      %56 = vector.extract_strided_slice %30 {offsets = [0, 0], sizes = [8, 384], strides = [1, 1]} : vector<24x384xf32> to vector<8x384xf32>
      %57 = arith.addf %55, %56 : vector<8x384xf32>
      %c0_40 = arith.constant 0 : index
      %58 = arith.index_cast %32 : i32 to index
      %c0_41 = arith.constant 0 : index
      %c0_42 = arith.constant 0 : index
      %59 = vector.load %arg5[%c0_40, %58, %c0_41, %c0_42] : memref<1x8x8x384xf32, #tpu.memory_space<vmem>>, vector<1x1x8x384xf32>
      %60 = vector.shape_cast %59 : vector<1x1x8x384xf32> to vector<8x384xf32>
      %61 = vector.shape_cast %57 : vector<8x384xf32> to vector<1x1x8x384xf32>
      tpu.vector_store %arg5[%c0_40, %58, %c0_41, %c0_42], %61 {strides = array<i32>} : memref<1x8x8x384xf32, #tpu.memory_space<vmem>>, vector<1x1x8x384xf32>,
    } else {
    }
    %c1_i32_28 = arith.constant 1 : i32
    %38 = arith.subi %31, %c1_i32_28 : i32
    %c0_i32_29 = arith.constant 0 : i32
    %39 = arith.cmpi sge, %38, %c0_i32_29 : i32
    %c8_i32_30 = arith.constant 8 : i32
    %40 = arith.cmpi slt, %38, %c8_i32_30 : i32
    %41 = arith.andi %39, %40 : i1
    %42 = arith.extui %41 : i1 to i32
    %c0_i32_31 = arith.constant 0 : i32
    %43 = arith.cmpi ne, %42, %c0_i32_31 : i32
    scf.if %43 {
      %c0_37 = arith.constant 0 : index
      %53 = arith.index_cast %38 : i32 to index
      %c0_38 = arith.constant 0 : index
      %c0_39 = arith.constant 0 : index
      %54 = vector.load %arg5[%c0_37, %53, %c0_38, %c0_39] : memref<1x8x8x384xf32, #tpu.memory_space<vmem>>, vector<1x1x8x384xf32>
      %55 = vector.shape_cast %54 : vector<1x1x8x384xf32> to vector<8x384xf32>
      %56 = vector.extract_strided_slice %30 {offsets = [8, 0], sizes = [8, 384], strides = [1, 1]} : vector<24x384xf32> to vector<8x384xf32>
      %57 = arith.addf %55, %56 : vector<8x384xf32>
      %c0_40 = arith.constant 0 : index
      %58 = arith.index_cast %38 : i32 to index
      %c0_41 = arith.constant 0 : index
      %c0_42 = arith.constant 0 : index
      %59 = vector.load %arg5[%c0_40, %58, %c0_41, %c0_42] : memref<1x8x8x384xf32, #tpu.memory_space<vmem>>, vector<1x1x8x384xf32>
      %60 = vector.shape_cast %59 : vector<1x1x8x384xf32> to vector<8x384xf32>
      %61 = vector.shape_cast %57 : vector<8x384xf32> to vector<1x1x8x384xf32>
      tpu.vector_store %arg5[%c0_40, %58, %c0_41, %c0_42], %61 {strides = array<i32>} : memref<1x8x8x384xf32, #tpu.memory_space<vmem>>, vector<1x1x8x384xf32>,
    } else {
    }
    %c2_i32_32 = arith.constant 2 : i32
    %44 = arith.subi %31, %c2_i32_32 : i32
    %c0_i32_33 = arith.constant 0 : i32
    %45 = arith.cmpi sge, %44, %c0_i32_33 : i32
    %c8_i32_34 = arith.constant 8 : i32
    %46 = arith.cmpi slt, %44, %c8_i32_34 : i32
    %47 = arith.andi %45, %46 : i1
    %48 = arith.extui %47 : i1 to i32
    %c0_i32_35 = arith.constant 0 : i32
    %49 = arith.cmpi ne, %48, %c0_i32_35 : i32
    scf.if %49 {
      %c0_37 = arith.constant 0 : index
      %53 = arith.index_cast %44 : i32 to index
      %c0_38 = arith.constant 0 : index
      %c0_39 = arith.constant 0 : index
      %54 = vector.load %arg5[%c0_37, %53, %c0_38, %c0_39] : memref<1x8x8x384xf32, #tpu.memory_space<vmem>>, vector<1x1x8x384xf32>
      %55 = vector.shape_cast %54 : vector<1x1x8x384xf32> to vector<8x384xf32>
      %56 = vector.extract_strided_slice %30 {offsets = [16, 0], sizes = [8, 384], strides = [1, 1]} : vector<24x384xf32> to vector<8x384xf32>
      %57 = arith.addf %55, %56 : vector<8x384xf32>
      %c0_40 = arith.constant 0 : index
      %58 = arith.index_cast %44 : i32 to index
      %c0_41 = arith.constant 0 : index
      %c0_42 = arith.constant 0 : index
      %59 = vector.load %arg5[%c0_40, %58, %c0_41, %c0_42] : memref<1x8x8x384xf32, #tpu.memory_space<vmem>>, vector<1x1x8x384xf32>
      %60 = vector.shape_cast %59 : vector<1x1x8x384xf32> to vector<8x384xf32>
      %61 = vector.shape_cast %57 : vector<8x384xf32> to vector<1x1x8x384xf32>
      tpu.vector_store %arg5[%c0_40, %58, %c0_41, %c0_42], %61 {strides = array<i32>} : memref<1x8x8x384xf32, #tpu.memory_space<vmem>>, vector<1x1x8x384xf32>,
    } else {
    }
    %c4_i32 = arith.constant 4 : i32
    %50 = arith.cmpi eq, %arg1, %c4_i32 : i32
    %51 = arith.extui %50 : i1 to i32
    %c0_i32_36 = arith.constant 0 : i32
    %52 = arith.cmpi ne, %51, %c0_i32_36 : i32
    scf.if %52 {
      %c0_37 = arith.constant 0 : index
      %c0_38 = arith.constant 0 : index
      %c0_39 = arith.constant 0 : index
      %c0_40 = arith.constant 0 : index
      %53 = vector.load %arg5[%c0_37, %c0_38, %c0_39, %c0_40] : memref<1x8x8x384xf32, #tpu.memory_space<vmem>>, vector<1x8x8x384xf32>
      %54 = vector.shape_cast %53 : vector<1x8x8x384xf32> to vector<8x8x384xf32>
      %cst_41 = arith.constant 0.000000e+00 : f32
      %55 = vector.broadcast %cst_41 : f32 to vector<8x8x384xf32>
      %56 = arith.maximumf %54, %55 : vector<8x8x384xf32>
      %c0_42 = arith.constant 0 : index
      %c0_43 = arith.constant 0 : index
      %c0_44 = arith.constant 0 : index
      %c0_45 = arith.constant 0 : index
      %57 = vector.load %arg5[%c0_42, %c0_43, %c0_44, %c0_45] : memref<1x8x8x384xf32, #tpu.memory_space<vmem>>, vector<1x8x8x384xf32>
      %58 = vector.shape_cast %57 : vector<1x8x8x384xf32> to vector<8x8x384xf32>
      %59 = vector.shape_cast %56 : vector<8x8x384xf32> to vector<1x8x8x384xf32>
      tpu.vector_store %arg5[%c0_42, %c0_43, %c0_44, %c0_45], %59 {strides = array<i32>} : memref<1x8x8x384xf32, #tpu.memory_space<vmem>>, vector<1x8x8x384xf32>,
    } else {
    }
    return
  }
  func.func @transform_0(%arg0: i32, %arg1: i32) -> (i32, i32, i32, i32) {
    %c0_i32 = arith.constant 0 : i32
    %c0_i32_0 = arith.constant 0 : i32
    %c0_i32_1 = arith.constant 0 : i32
    return %arg0, %arg1, %c0_i32, %c0_i32_0 : i32, i32, i32, i32
  }
  func.func @transform_1(%arg0: i32, %arg1: i32) -> (i32, i32) {
    %c0_i32 = arith.constant 0 : i32
    %c0_i32_0 = arith.constant 0 : i32
    %c0_i32_1 = arith.constant 0 : i32
    return %c0_i32, %c0_i32_0 : i32, i32
  }
  func.func @transform_2(%arg0: i32, %arg1: i32) -> (i32, i32) {
    %c0_i32 = arith.constant 0 : i32
    %c0_i32_0 = arith.constant 0 : i32
    %c0_i32_1 = arith.constant 0 : i32
    return %c0_i32, %c0_i32_0 : i32, i32
  }
  func.func @transform_3(%arg0: i32, %arg1: i32) -> (i32, i32, i32, i32) {
    %c0_i32 = arith.constant 0 : i32
    %c0_i32_0 = arith.constant 0 : i32
    %c0_i32_1 = arith.constant 0 : i32
    %c0_i32_2 = arith.constant 0 : i32
    return %arg0, %c0_i32, %c0_i32_0, %c0_i32_1 : i32, i32, i32, i32
  }
}

</mosaic_0001>

<llo_original>
// kernel: single_up_forward.1
$region0: #{single_up_forward.1}
  #allocation0 [shape = 'u32[]', space=smem, size = 0x4, offset = 0x4, fixed_abs, tag = 'smem constant byte address 0x4 - core index']
  #allocation1 [shape = 'u32[144,128]{1,0:T(1,128)}', space=vmem, size = 0x12000, scoped, tag = 'internal scratch']
  %s0 = inlined_call_operand.vmem [shape: bf16[2,10,128,384], index: 0, kind: input, shape index: {}]
  %s1 = inlined_call_operand.vmem [shape: bf16[24,128], index: 1, kind: input, shape index: {}]
  %s2 = inlined_call_operand.vmem [shape: f32[8,1], index: 2, kind: input, shape index: {}]
  %s3 = inlined_call_operand.vmem [shape: f32[2,8,8,384], index: 3, kind: output, shape index: {}]
  %s4 = sld [smem:[#allocation0]]
  $region77: #{single_up_forward.1} parent=0
    _
  %s6 = ssub.s32 1, %s4
  %s7 = scalar_select 0, %s6, %s4
  loop: start=0, step=1, limit=12
  $region2: #{single_up_forward.1} parent=0 // loop_pre_header
    _
  $region3: #{single_up_forward.1} parent=0 // loop_header
    %s9 = sphi 0, %s13
    %p10 = scmp.ge.s32.totalorder %s9, 12
    %s16 = sphi 0, %s28
    %s17 = sphi 0, %s24
    %s18 = sphi 0, %s16
    %s19 = sphi 0, %s17
    %s20 = sphi 0, %s18
    %s21 = sphi 0, %s19
    %s33 = sphi 0, %s35
    %s36 = sphi 0, %s33
    %s37 = sphi 0, %s36
    %s53 = sphi 0, %s37
    %s57 = sphi 0, %s57
    %s59 = sphi 0, %s57
    %s60 = sphi 0, %s59
    %s74 = sphi 0, %s60
    %s78 = sphi 0, %s78
    %s80 = sphi 0, %s78
    %s81 = sphi 0, %s80
    %s95 = sphi 0, %s81
    %s101 = sphi 0, %s103
    %s104 = sphi 0, %s101
    %s105 = sphi 0, %s104
    %s121 = sphi 0, %s105
  $region4: #{single_up_forward.1} parent=0 // loop_header_branch
    %12 = sbr.rel (%p10) target = $region8
  $region5: #{single_up_forward.1} parent=0 // loop_body
    %s14 = ssub.s32 %s9, 1
    %s15 = ssub.s32 %s9, 2
    %s22 = sadd.s32 1, %s17
    %p23 = scmp.ge.s32.totalorder %s22, 5
    %s24 = scalar_select %p23, 0, %s22
    %s25 = sadd.s32 1, %s16
    %s26 = scalar_select %p23, %s25, %s16
    %p27 = scmp.ge.s32.totalorder %s26, 2
    %s28 = scalar_select %p27, 0, %s26
    %s29 = ssub.s32 %s16, %s28
    %s30 = ssub.s32 %s17, %s24
    %s31 = sor.u32 %s29, %s30
    %p32 = scmp.eq.s32.totalorder %s31, 0
    %s34 = sadd.s32 %s33, 1
    %s35 = scalar_select %p32, %s33, %s34
    %p38 = pneg %p32
    %p39 = scmp.eq.s32.totalorder %s9, 9
    %p40 = por %p38, %p39
    %p41 = scmp.ne.s32.totalorder %s33, %s36
    %p42 = scmp.eq.s32.totalorder %s9, 0
    %p43 = por %p41, %p42
    %p44 = scmp.ne.s32.totalorder %s33, %s36
    %p45 = scmp.eq.s32.totalorder %s14, 9
    %p46 = por %p44, %p45
    %p47 = scmp.ne.s32.totalorder %s36, %s37
    %p48 = scmp.eq.s32.totalorder %s14, 0
    %p49 = por %p47, %p48
    %p50 = scmp.ne.s32.totalorder %s36, %s37
    %p51 = scmp.eq.s32.totalorder %s15, 9
    %p52 = por %p50, %p51
    %p54 = scmp.ne.s32.totalorder %s37, %s53
    %p55 = scmp.eq.s32.totalorder %s15, 0
    %p56 = por %p54, %p55
    %s58 = sadd.s32 %s57, 1
    %p61 = scmp.eq.s32.totalorder %s9, 9
    %p62 = scmp.ne.s32.totalorder %s57, %s59
    %p63 = scmp.eq.s32.totalorder %s9, 0
    %p64 = por %p62, %p63
    %p65 = scmp.ne.s32.totalorder %s57, %s59
    %p66 = scmp.eq.s32.totalorder %s14, 9
    %p67 = por %p65, %p66
    %p68 = scmp.ne.s32.totalorder %s59, %s60
    %p69 = scmp.eq.s32.totalorder %s14, 0
    %p70 = por %p68, %p69
    %p71 = scmp.ne.s32.totalorder %s59, %s60
    %p72 = scmp.eq.s32.totalorder %s15, 9
    %p73 = por %p71, %p72
    %p75 = scmp.ne.s32.totalorder %s60, %s74
    %p76 = scmp.eq.s32.totalorder %s15, 0
    %p77 = por %p75, %p76
    %s79 = sadd.s32 %s78, 1
    %p82 = scmp.eq.s32.totalorder %s9, 9
    %p83 = scmp.ne.s32.totalorder %s78, %s80
    %p84 = scmp.eq.s32.totalorder %s9, 0
    %p85 = por %p83, %p84
    %p86 = scmp.ne.s32.totalorder %s78, %s80
    %p87 = scmp.eq.s32.totalorder %s14, 9
    %p88 = por %p86, %p87
    %p89 = scmp.ne.s32.totalorder %s80, %s81
    %p90 = scmp.eq.s32.totalorder %s14, 0
    %p91 = por %p89, %p90
    %p92 = scmp.ne.s32.totalorder %s80, %s81
    %p93 = scmp.eq.s32.totalorder %s15, 9
    %p94 = por %p92, %p93
    %p96 = scmp.ne.s32.totalorder %s81, %s95
    %p97 = scmp.eq.s32.totalorder %s15, 0
    %p98 = por %p96, %p97
    %s99 = ssub.s32 %s16, %s28
    %p100 = scmp.eq.s32.totalorder %s99, 0
    %s102 = sadd.s32 %s101, 1
    %s103 = scalar_select %p100, %s101, %s102
    %p106 = pneg %p100
    %p107 = scmp.eq.s32.totalorder %s9, 9
    %p108 = por %p106, %p107
    %p109 = scmp.ne.s32.totalorder %s101, %s104
    %p110 = scmp.eq.s32.totalorder %s9, 0
    %p111 = por %p109, %p110
    %p112 = scmp.ne.s32.totalorder %s101, %s104
    %p113 = scmp.eq.s32.totalorder %s14, 9
    %p114 = por %p112, %p113
    %p115 = scmp.ne.s32.totalorder %s104, %s105
    %p116 = scmp.eq.s32.totalorder %s14, 0
    %p117 = por %p115, %p116
    %p118 = scmp.ne.s32.totalorder %s104, %s105
    %p119 = scmp.eq.s32.totalorder %s15, 9
    %p120 = por %p118, %p119
    %p122 = scmp.ne.s32.totalorder %s105, %s121
    %p123 = scmp.eq.s32.totalorder %s15, 0
    %p124 = por %p122, %p123
    %p125 = scmp.le.s32.totalorder 1, %s9
    %p126 = scmp.lt.s32.totalorder %s9, 11
    %p127 = pnand %p125, %p126
    %p128 = pneg %p127
    // Predicated region
    $region9: #{single_up_forward.1} parent=5 // pred_check
      _
    $region10: #{single_up_forward.1} parent=5 // pred_check_branch
      %130 = sbr.rel (%p127) target = $region12
    $region11: #{single_up_forward.1} parent=5 // pred_region
      %s131 = ssub.s32 %s9, 1
      // Predicated region
      $region13: #{single_up_forward.1} parent=11 // pred_check
        %p132 = pneg %p70
      $region14: #{single_up_forward.1} parent=11 // pred_check_branch
        %134 = sbr.rel (%p132) target = $region16
      $region15: #{single_up_forward.1} parent=11 // pred_region
        _
      $region16: #{single_up_forward.1} parent=11 // pred_fallthru
        _
      // Predicated region
      $region17: #{single_up_forward.1} parent=11 // pred_check
        %p135 = pneg %p91
      $region18: #{single_up_forward.1} parent=11 // pred_check_branch
        %137 = sbr.rel (%p135) target = $region20
      $region19: #{single_up_forward.1} parent=11 // pred_region
        _
      $region20: #{single_up_forward.1} parent=11 // pred_fallthru
        _
    $region12: #{single_up_forward.1} parent=5 // pred_fallthru
      _
    %p138 = scmp.lt.s32.totalorder %s9, 10
    // Predicated region
    $region21: #{single_up_forward.1} parent=5 // pred_check
      %p139 = pneg %p138
    $region22: #{single_up_forward.1} parent=5 // pred_check_branch
      %141 = sbr.rel (%p139) target = $region24
    $region23: #{single_up_forward.1} parent=5 // pred_region
      // Predicated region
      $region25: #{single_up_forward.1} parent=23 // pred_check
        %p142 = pneg %p43
      $region26: #{single_up_forward.1} parent=23 // pred_check_branch
        %144 = sbr.rel (%p142) target = $region28
      $region27: #{single_up_forward.1} parent=23 // pred_region
        %s145 = smul.u32 2, %s17
        %p146 = scmp.lt.s32.totalorder %s16, 1
        %s147 = scalar_select %p146, %s16, 1
        %p148 = scmp.lt.s32.totalorder %s145, 9
        %s149 = scalar_select %p148, %s145, 9
        %s150 = smul.addr %s149, 48
        %s151 = smul.addr %s147, 480
        %s152 = sadd.s32 %s150, %s151
        %s153 = smul.addr %s152, 4
        %s154 = scalar_lea.vmem %s0, %s153
        %s155 = smul.u32 2, %s17
      $region28: #{single_up_forward.1} parent=23 // pred_fallthru
        _
    $region24: #{single_up_forward.1} parent=5 // pred_fallthru
      _
    %p156 = scmp.le.s32.totalorder 1, %s9
    %p157 = scmp.lt.s32.totalorder %s9, 11
    %p158 = pnand %p156, %p157
    %p159 = pneg %p158
    // Predicated region
    $region29: #{single_up_forward.1} parent=5 // pred_check
      _
    $region30: #{single_up_forward.1} parent=5 // pred_check_branch
      %161 = sbr.rel (%p158) target = $region32
    $region31: #{single_up_forward.1} parent=5 // pred_region
      %s162 = ssub.s32 %s9, 1
      %s163 = smul.u32 2, %s19
      %p164 = scmp.lt.s32.totalorder %s18, 1
      %s165 = scalar_select %p164, %s18, 1
      %p166 = scmp.lt.s32.totalorder %s163, 9
      %s167 = scalar_select %p166, %s163, 9
      %s168 = smul.addr %s167, 48
      %s169 = smul.addr %s165, 480
      %s170 = sadd.s32 %s168, %s169
      %s171 = smul.addr %s170, 4
      %s172 = scalar_lea.vmem %s0, %s171
      %p173 = pneg %p49
      %p174 = pneg %p46
      %p175 = pneg %p70
      %p176 = pneg %p67
      %p177 = pneg %p91
      %p178 = pneg %p88
      %p179 = pneg %p117
      %p180 = pneg %p114
      %p181 = scmp.lt.s32.totalorder %s18, 1
      %s182 = scalar_select %p181, %s18, 1
      %s183 = smul.addr %s182, 24
      %s184 = smul.addr %s183, 8
      %s185 = scalar_lea.vmem %s3, %s184
      %s186 = smul.u32 2, %s19
      %p187 = scmp.lt.s32.totalorder %s18, 1
      %s188 = scalar_select %p187, %s18, 1
      %p189 = scmp.lt.s32.totalorder %s186, 9
      %s190 = scalar_select %p189, %s186, 9
      %s191 = smul.addr %s190, 48
      %s192 = smul.addr %s188, 480
      %s193 = sadd.s32 %s191, %s192
      %s194 = smul.addr %s193, 4
      %s195 = scalar_lea.vmem %s0, %s194
      %s196 = smul.u32 2, %s19
      %p197 = scmp.lt.s32.totalorder %s18, 1
      %s198 = scalar_select %p197, %s18, 1
      %s199 = smul.addr %s198, 24
      %s200 = smul.addr %s199, 8
      %s201 = scalar_lea.vmem %s3, %s200
      %p203 = scmp.eq.s32.totalorder %s19, 0
      // Predicated region
      $region33: #{single_up_forward.1} parent=31 // pred_check
        %p204 = pneg %p203
      $region34: #{single_up_forward.1} parent=31 // pred_check_branch
        %206 = sbr.rel (%p204) target = $region36
      $region35: #{single_up_forward.1} parent=31 // pred_region
        %v207 = vld [vmem:[%s2] sm:$0xff]
        %209 = vset.pattern.permute.xlu0 0
        %210 = vperm.xlu0 %209, %v207
        %v211 = vpop.permute.xlu0 %210
        %213 = vst [vmem:[%s201] sm:$0xff] %v211
        %214 = vst [vmem:[%s201 + $0x8] sm:$0xff] %v211
        %215 = vst [vmem:[%s201 + $0x10] sm:$0xff] %v211
        %216 = vst [vmem:[%s201 + $0x18] sm:$0xff] %v211
        %217 = vst [vmem:[%s201 + $0x20] sm:$0xff] %v211
        %218 = vst [vmem:[%s201 + $0x28] sm:$0xff] %v211
        %219 = vst [vmem:[%s201 + $0x30] sm:$0xff] %v211
        %220 = vst [vmem:[%s201 + $0x38] sm:$0xff] %v211
        %221 = vst [vmem:[%s201 + $0x40] sm:$0xff] %v211
        %222 = vst [vmem:[%s201 + $0x48] sm:$0xff] %v211
        %223 = vst [vmem:[%s201 + $0x50] sm:$0xff] %v211
        %224 = vst [vmem:[%s201 + $0x58] sm:$0xff] %v211
        %225 = vst [vmem:[%s201 + $0x60] sm:$0xff] %v211
        %226 = vst [vmem:[%s201 + $0x68] sm:$0xff] %v211
        %227 = vst [vmem:[%s201 + $0x70] sm:$0xff] %v211
        %228 = vst [vmem:[%s201 + $0x78] sm:$0xff] %v211
        %229 = vst [vmem:[%s201 + $0x80] sm:$0xff] %v211
        %230 = vst [vmem:[%s201 + $0x88] sm:$0xff] %v211
        %231 = vst [vmem:[%s201 + $0x90] sm:$0xff] %v211
        %232 = vst [vmem:[%s201 + $0x98] sm:$0xff] %v211
        %233 = vst [vmem:[%s201 + $0xa0] sm:$0xff] %v211
        %234 = vst [vmem:[%s201 + $0xa8] sm:$0xff] %v211
        %235 = vst [vmem:[%s201 + $0xb0] sm:$0xff] %v211
        %236 = vst [vmem:[%s201 + $0xb8] sm:$0xff] %v211
      $region36: #{single_up_forward.1} parent=31 // pred_fallthru
        _
      %s237 = smul.u32 %s19, 2
      %v238 = vld [vmem:[%s1] sm:$0xf]
      %v239 = vld [vmem:[%s1 + $0x4] sm:$0xf]
      %v240 = vld [vmem:[%s1 + $0x8] sm:$0xf]
      %v241 = vld [vmem:[%s195] sm:$0xff]
      %v242 = vld [vmem:[%s195 + $0x8] sm:$0xf]
      %v243 = vld [vmem:[%s195 + $0xc] sm:$0xff]
      %v244 = vld [vmem:[%s195 + $0x14] sm:$0xf]
      %v245 = vld [vmem:[%s195 + $0x18] sm:$0xff]
      %v246 = vld [vmem:[%s195 + $0x20] sm:$0xf]
      %v247 = vld [vmem:[%s195 + $0x24] sm:$0xff]
      %v248 = vld [vmem:[%s195 + $0x2c] sm:$0xf]
      %v249 = vld [vmem:[%s195 + $0x30] sm:$0xff]
      %v250 = vld [vmem:[%s195 + $0x38] sm:$0xf]
      %v251 = vld [vmem:[%s195 + $0x3c] sm:$0xff]
      %v252 = vld [vmem:[%s195 + $0x44] sm:$0xf]
      %v253 = vld [vmem:[%s195 + $0x48] sm:$0xff]
      %v254 = vld [vmem:[%s195 + $0x50] sm:$0xf]
      %v255 = vld [vmem:[%s195 + $0x54] sm:$0xff]
      %v256 = vld [vmem:[%s195 + $0x5c] sm:$0xf]
      %v257 = vld [vmem:[%s195 + $0x60] sm:$0xff]
      %v258 = vld [vmem:[%s195 + $0x68] sm:$0xf]
      %v259 = vld [vmem:[%s195 + $0x6c] sm:$0xff]
      %v260 = vld [vmem:[%s195 + $0x74] sm:$0xf]
      %v261 = vld [vmem:[%s195 + $0x78] sm:$0xff]
      %v262 = vld [vmem:[%s195 + $0x80] sm:$0xf]
      %v263 = vld [vmem:[%s195 + $0x84] sm:$0xff]
      %v264 = vld [vmem:[%s195 + $0x8c] sm:$0xf]
      %v265 = vld [vmem:[%s195 + $0x90] sm:$0xff]
      %v266 = vld [vmem:[%s195 + $0x98] sm:$0xf]
      %v267 = vld [vmem:[%s195 + $0x9c] sm:$0xff]
      %v268 = vld [vmem:[%s195 + $0xa4] sm:$0xf]
      %v269 = vld [vmem:[%s195 + $0xa8] sm:$0xff]
      %v270 = vld [vmem:[%s195 + $0xb0] sm:$0xf]
      %v271 = vld [vmem:[%s195 + $0xb4] sm:$0xff]
      %v272 = vld [vmem:[%s195 + $0xbc] sm:$0xf]
      %v276 = vunpack.c.l.b16 %v238
      %v277 = vunpack.c.l.b16 %v239
      %v278 = vunpack.c.l.b16 %v240
      %v279 = vpack.c.b16 %v277, %v276
      %v280 = vpack.c.b16 %v278, %v278
      %v315 = vunpack.c.l.b16 %v241
      %v316 = vunpack.c.h.b16 %v241
      %v317 = vunpack.c.l.b16 %v242
      %v318 = vunpack.c.l.b16 %v243
      %v319 = vunpack.c.h.b16 %v243
      %v320 = vunpack.c.l.b16 %v244
      %v321 = vunpack.c.l.b16 %v245
      %v322 = vunpack.c.h.b16 %v245
      %v323 = vunpack.c.l.b16 %v246
      %v324 = vunpack.c.l.b16 %v247
      %v325 = vunpack.c.h.b16 %v247
      %v326 = vunpack.c.l.b16 %v248
      %v327 = vunpack.c.l.b16 %v249
      %v328 = vunpack.c.h.b16 %v249
      %v329 = vunpack.c.l.b16 %v250
      %v330 = vunpack.c.l.b16 %v251
      %v331 = vunpack.c.h.b16 %v251
      %v332 = vunpack.c.l.b16 %v252
      %v333 = vunpack.c.l.b16 %v253
      %v334 = vunpack.c.h.b16 %v253
      %v335 = vunpack.c.l.b16 %v254
      %v336 = vunpack.c.l.b16 %v255
      %v337 = vunpack.c.h.b16 %v255
      %v338 = vunpack.c.l.b16 %v256
      %v339 = vunpack.c.l.b16 %v257
      %v340 = vunpack.c.h.b16 %v257
      %v341 = vunpack.c.l.b16 %v258
      %v342 = vunpack.c.l.b16 %v259
      %v343 = vunpack.c.h.b16 %v259
      %v344 = vunpack.c.l.b16 %v260
      %v345 = vunpack.c.l.b16 %v261
      %v346 = vunpack.c.h.b16 %v261
      %v347 = vunpack.c.l.b16 %v262
      %v348 = vunpack.c.l.b16 %v263
      %v349 = vunpack.c.h.b16 %v263
      %v350 = vunpack.c.l.b16 %v264
      %v351 = vunpack.c.l.b16 %v265
      %v352 = vunpack.c.h.b16 %v265
      %v353 = vunpack.c.l.b16 %v266
      %v354 = vunpack.c.l.b16 %v267
      %v355 = vunpack.c.h.b16 %v267
      %v356 = vunpack.c.l.b16 %v268
      %v357 = vunpack.c.l.b16 %v269
      %v358 = vunpack.c.h.b16 %v269
      %v359 = vunpack.c.l.b16 %v270
      %v360 = vunpack.c.l.b16 %v271
      %v361 = vunpack.c.h.b16 %v271
      %v362 = vunpack.c.l.b16 %v272
      %v363 = vpack.c.b16 %v318, %v315
      %v364 = vpack.c.b16 %v319, %v316
      %v365 = vpack.c.b16 %v320, %v317
      %v366 = vpack.c.b16 %v324, %v321
      %v367 = vpack.c.b16 %v325, %v322
      %v368 = vpack.c.b16 %v326, %v323
      %v369 = vpack.c.b16 %v330, %v327
      %v370 = vpack.c.b16 %v331, %v328
      %v371 = vpack.c.b16 %v332, %v329
      %v372 = vpack.c.b16 %v336, %v333
      %v373 = vpack.c.b16 %v337, %v334
      %v374 = vpack.c.b16 %v338, %v335
      %v375 = vpack.c.b16 %v342, %v339
      %v376 = vpack.c.b16 %v343, %v340
      %v377 = vpack.c.b16 %v344, %v341
      %v378 = vpack.c.b16 %v348, %v345
      %v379 = vpack.c.b16 %v349, %v346
      %v380 = vpack.c.b16 %v350, %v347
      %v381 = vpack.c.b16 %v354, %v351
      %v382 = vpack.c.b16 %v355, %v352
      %v383 = vpack.c.b16 %v356, %v353
      %v384 = vpack.c.b16 %v360, %v357
      %v385 = vpack.c.b16 %v361, %v358
      %v386 = vpack.c.b16 %v362, %v359
      %411 = vmatprep.subr.bf16.mxu0 %v385
      %412 = vmatpush1.bf16.msra.mxu0 %v384
      %413 = vmatprep.subr.bf16.mxu0 %v382
      %414 = vmatpush1.bf16.msra.mxu0 %v381
      %415 = vmatprep.subr.bf16.mxu0 %v379
      %416 = vmatpush1.bf16.msra.mxu0 %v378
      %417 = vmatprep.subr.bf16.mxu0 %v376
      %418 = vmatpush1.bf16.msra.mxu0 %v375
      %419 = vmatprep.subr.bf16.mxu0 %v373
      %420 = vmatpush1.bf16.msra.mxu0 %v372
      %421 = vmatprep.subr.bf16.mxu0 %v370
      %422 = vmatpush1.bf16.msra.mxu0 %v369
      %423 = vmatprep.subr.bf16.mxu0 %v367
      %424 = vmatpush1.bf16.msra.mxu0 %v366
      %425 = vmatprep.subr.bf16.mxu0 %v364
      %426 = vmatpush1.bf16.msra.mxu0 %v363
      %427 = vmatprep.subr.bf16.mxu0 0
      %428 = vmatpush2.bf16.msra.mxu0 0
      %429 = vmatprep.subr.bf16.mxu0 0
      %430 = vmatpush2.bf16.msra.mxu0 0
      %431 = vmatprep.subr.bf16.mxu0 0
      %432 = vmatpush2.bf16.msra.mxu0 0
      %433 = vmatprep.subr.bf16.mxu0 0
      %434 = vmatpush2.bf16.msra.mxu0 0
      %435 = vmatprep.subr.bf16.mxu0 0
      %436 = vmatpush2.bf16.msra.mxu0 0
      %437 = vmatprep.subr.bf16.mxu0 0
      %438 = vmatpush2.bf16.msra.mxu0 0
      %439 = vmatprep.subr.bf16.mxu0 0
      %440 = vmatpush2.bf16.msra.mxu0 0
      %441 = vmatprep.subr.bf16.mxu0 0
      %442 = vmatpush2.bf16.msra.mxu0 0
      %443 = vmatprep.mubr.bf16.mxu0 0
      %444 = vmatmul.mubr.bf16.gmra.mxu0 %v279
      %v445 = vpop.f32.mrf.mxu0
      %v446 = vadd.f32 0.0, %v445
      %v447 = vpop.f32.mrf.mxu0
      %v448 = vadd.f32 0.0, %v447
      %v449 = vpop.f32.mrf.mxu0
      %v450 = vadd.f32 0.0, %v449
      %v451 = vpop.f32.mrf.mxu0
      %v452 = vadd.f32 0.0, %v451
      %453 = vmatprep.mubr.bf16.mxu0 0
      %454 = vmatmul.mubr.bf16.gmra.mxu0 %v280
      %v455 = vpop.f32.mrf.mxu0
      %v456 = vadd.f32 0.0, %v455
      %v457 = vpop.f32.mrf.mxu0
      %v458 = vadd.f32 0.0, %v457
      %v459 = vpop.f32.mrf.mxu0
      %v460 = vpop.f32.mrf.mxu0
      %461 = vdwg.mxu0
      %462 = vmatprep.subr.bf16.mxu0 0
      %463 = vmatpush1.bf16.msra.mxu0 %v386
      %464 = vmatprep.subr.bf16.mxu0 0
      %465 = vmatpush1.bf16.msra.mxu0 %v383
      %466 = vmatprep.subr.bf16.mxu0 0
      %467 = vmatpush1.bf16.msra.mxu0 %v380
      %468 = vmatprep.subr.bf16.mxu0 0
      %469 = vmatpush1.bf16.msra.mxu0 %v377
      %470 = vmatprep.subr.bf16.mxu0 0
      %471 = vmatpush1.bf16.msra.mxu0 %v374
      %472 = vmatprep.subr.bf16.mxu0 0
      %473 = vmatpush1.bf16.msra.mxu0 %v371
      %474 = vmatprep.subr.bf16.mxu0 0
      %475 = vmatpush1.bf16.msra.mxu0 %v368
      %476 = vmatprep.subr.bf16.mxu0 0
      %477 = vmatpush1.bf16.msra.mxu0 %v365
      %478 = vmatprep.subr.bf16.mxu0 0
      %479 = vmatpush2.bf16.msra.mxu0 0
      %480 = vmatprep.subr.bf16.mxu0 0
      %481 = vmatpush2.bf16.msra.mxu0 0
      %482 = vmatprep.subr.bf16.mxu0 0
      %483 = vmatpush2.bf16.msra.mxu0 0
      %484 = vmatprep.subr.bf16.mxu0 0
      %485 = vmatpush2.bf16.msra.mxu0 0
      %486 = vmatprep.subr.bf16.mxu0 0
      %487 = vmatpush2.bf16.msra.mxu0 0
      %488 = vmatprep.subr.bf16.mxu0 0
      %489 = vmatpush2.bf16.msra.mxu0 0
      %490 = vmatprep.subr.bf16.mxu0 0
      %491 = vmatpush2.bf16.msra.mxu0 0
      %492 = vmatprep.subr.bf16.mxu0 0
      %493 = vmatpush2.bf16.msra.mxu0 0
      %494 = vmatprep.mubr.bf16.mxu0 0
      %495 = vmatmul.mubr.bf16.gmra.mxu0 %v279
      %v496 = vpop.f32.mrf.mxu0
      %v497 = vadd.f32 0.0, %v496
      %v498 = vpop.f32.mrf.mxu0
      %v499 = vpop.f32.mrf.mxu0
      %v500 = vadd.f32 0.0, %v499
      %v501 = vpop.f32.mrf.mxu0
      %502 = vmatprep.mubr.bf16.mxu0 0
      %503 = vmatmul.mubr.bf16.gmra.mxu0 %v280
      %v504 = vpop.f32.mrf.mxu0
      %v505 = vadd.f32 0.0, %v504
      %v506 = vpop.f32.mrf.mxu0
      %v507 = vpop.f32.mrf.mxu0
      %v508 = vpop.f32.mrf.mxu0
      %509 = vdwg.mxu0
      %p510 = scmp.ge.s32.totalorder %s237, 0
      %p511 = scmp.lt.s32.totalorder %s237, 8
      %p512 = pnand %p510, %p511
      %p513 = pneg %p512
      // Predicated region
      $region37: #{single_up_forward.1} parent=31 // pred_check
        _
      $region38: #{single_up_forward.1} parent=31 // pred_check_branch
        %515 = sbr.rel (%p512) target = $region40
      $region39: #{single_up_forward.1} parent=31 // pred_region
        %s516 = smul.u32 %s237, 3
        %s517 = smul.addr %s516, 8
        %s518 = scalar_lea.vmem %s201, %s517
        %v519 = vld [vmem:[%s518] sm:$0xff]
        %v520 = vld [vmem:[%s518 + $0x8] sm:$0xff]
        %v521 = vld [vmem:[%s518 + $0x10] sm:$0xff]
        %v522 = vadd.f32 %v519, %v446
        %v523 = vadd.f32 %v520, %v448
        %v524 = vadd.f32 %v521, %v497
        %525 = vst [vmem:[%s518] sm:$0xff] %v522
        %526 = vst [vmem:[%s518 + $0x8] sm:$0xff] %v523
        %527 = vst [vmem:[%s518 + $0x10] sm:$0xff] %v524
      $region40: #{single_up_forward.1} parent=31 // pred_fallthru
        _
      %s528 = sadd.s32 %s237, 4294967295
      %p529 = scmp.ge.s32.totalorder %s528, 0
      %p530 = scmp.lt.s32.totalorder %s528, 8
      %p531 = pnand %p529, %p530
      %p532 = pneg %p531
      // Predicated region
      $region41: #{single_up_forward.1} parent=31 // pred_check
        _
      $region42: #{single_up_forward.1} parent=31 // pred_check_branch
        %534 = sbr.rel (%p531) target = $region44
      $region43: #{single_up_forward.1} parent=31 // pred_region
        %s535 = smul.u32 %s528, 3
        %s536 = smul.addr %s535, 8
        %s537 = scalar_lea.vmem %s201, %s536
        %v538 = vld [vmem:[%s537] sm:$0xff]
        %v539 = vld [vmem:[%s537 + $0x8] sm:$0xff]
        %v540 = vld [vmem:[%s537 + $0x10] sm:$0xff]
        %v541 = vadd.f32 %v538, %v450
        %v542 = vadd.f32 %v539, %v452
        %v543 = vadd.f32 %v540, %v500
        %544 = vst [vmem:[%s537] sm:$0xff] %v541
        %545 = vst [vmem:[%s537 + $0x8] sm:$0xff] %v542
        %546 = vst [vmem:[%s537 + $0x10] sm:$0xff] %v543
      $region44: #{single_up_forward.1} parent=31 // pred_fallthru
        _
      %s547 = sadd.s32 %s237, 4294967294
      %p548 = scmp.ge.s32.totalorder %s547, 0
      %p549 = scmp.lt.s32.totalorder %s547, 8
      %p550 = pnand %p548, %p549
      %p551 = pneg %p550
      // Predicated region
      $region45: #{single_up_forward.1} parent=31 // pred_check
        _
      $region46: #{single_up_forward.1} parent=31 // pred_check_branch
        %553 = sbr.rel (%p550) target = $region48
      $region47: #{single_up_forward.1} parent=31 // pred_region
        %s554 = smul.u32 %s547, 3
        %s555 = smul.addr %s554, 8
        %s556 = scalar_lea.vmem %s201, %s555
        %v557 = vld [vmem:[%s556] sm:$0xff]
        %v558 = vld [vmem:[%s556 + $0x8] sm:$0xff]
        %v559 = vld [vmem:[%s556 + $0x10] sm:$0xff]
        %v560 = vadd.f32 %v557, %v456
        %v561 = vadd.f32 %v558, %v458
        %v562 = vadd.f32 %v559, %v505
        %563 = vst [vmem:[%s556] sm:$0xff] %v560
        %564 = vst [vmem:[%s556 + $0x8] sm:$0xff] %v561
        %565 = vst [vmem:[%s556 + $0x10] sm:$0xff] %v562
      $region48: #{single_up_forward.1} parent=31 // pred_fallthru
        _
      %v566 = vld [vmem:[%s1] sm:$0xf]
      %v567 = vld [vmem:[%s1 + $0x4] sm:$0xf]
      %v568 = vld [vmem:[%s1 + $0x8] sm:$0xf]
      %s569 = scalar_lea.vmem %s195, 192
      %v570 = vld [vmem:[%s569] sm:$0xff]
      %v571 = vld [vmem:[%s569 + $0x8] sm:$0xf]
      %v572 = vld [vmem:[%s569 + $0xc] sm:$0xff]
      %v573 = vld [vmem:[%s569 + $0x14] sm:$0xf]
      %v574 = vld [vmem:[%s569 + $0x18] sm:$0xff]
      %v575 = vld [vmem:[%s569 + $0x20] sm:$0xf]
      %v576 = vld [vmem:[%s569 + $0x24] sm:$0xff]
      %v577 = vld [vmem:[%s569 + $0x2c] sm:$0xf]
      %v578 = vld [vmem:[%s569 + $0x30] sm:$0xff]
      %v579 = vld [vmem:[%s569 + $0x38] sm:$0xf]
      %v580 = vld [vmem:[%s569 + $0x3c] sm:$0xff]
      %v581 = vld [vmem:[%s569 + $0x44] sm:$0xf]
      %v582 = vld [vmem:[%s569 + $0x48] sm:$0xff]
      %v583 = vld [vmem:[%s569 + $0x50] sm:$0xf]
      %v584 = vld [vmem:[%s569 + $0x54] sm:$0xff]
      %v585 = vld [vmem:[%s569 + $0x5c] sm:$0xf]
      %v586 = vld [vmem:[%s569 + $0x60] sm:$0xff]
      %v587 = vld [vmem:[%s569 + $0x68] sm:$0xf]
      %v588 = vld [vmem:[%s569 + $0x6c] sm:$0xff]
      %v589 = vld [vmem:[%s569 + $0x74] sm:$0xf]
      %v590 = vld [vmem:[%s569 + $0x78] sm:$0xff]
      %v591 = vld [vmem:[%s569 + $0x80] sm:$0xf]
      %v592 = vld [vmem:[%s569 + $0x84] sm:$0xff]
      %v593 = vld [vmem:[%s569 + $0x8c] sm:$0xf]
      %v594 = vld [vmem:[%s569 + $0x90] sm:$0xff]
      %v595 = vld [vmem:[%s569 + $0x98] sm:$0xf]
      %v596 = vld [vmem:[%s569 + $0x9c] sm:$0xff]
      %v597 = vld [vmem:[%s569 + $0xa4] sm:$0xf]
      %v598 = vld [vmem:[%s569 + $0xa8] sm:$0xff]
      %v599 = vld [vmem:[%s569 + $0xb0] sm:$0xf]
      %v600 = vld [vmem:[%s569 + $0xb4] sm:$0xff]
      %v601 = vld [vmem:[%s569 + $0xbc] sm:$0xf]
      %v605 = vunpack.c.l.b16 %v566
      %v606 = vunpack.c.l.b16 %v567
      %v607 = vunpack.c.l.b16 %v568
      %v608 = vpack.c.b16 %v606, %v605
      %v609 = vpack.c.b16 %v607, %v607
      %v644 = vunpack.c.l.b16 %v570
      %v645 = vunpack.c.h.b16 %v570
      %v646 = vunpack.c.l.b16 %v571
      %v647 = vunpack.c.l.b16 %v572
      %v648 = vunpack.c.h.b16 %v572
      %v649 = vunpack.c.l.b16 %v573
      %v650 = vunpack.c.l.b16 %v574
      %v651 = vunpack.c.h.b16 %v574
      %v652 = vunpack.c.l.b16 %v575
      %v653 = vunpack.c.l.b16 %v576
      %v654 = vunpack.c.h.b16 %v576
      %v655 = vunpack.c.l.b16 %v577
      %v656 = vunpack.c.l.b16 %v578
      %v657 = vunpack.c.h.b16 %v578
      %v658 = vunpack.c.l.b16 %v579
      %v659 = vunpack.c.l.b16 %v580
      %v660 = vunpack.c.h.b16 %v580
      %v661 = vunpack.c.l.b16 %v581
      %v662 = vunpack.c.l.b16 %v582
      %v663 = vunpack.c.h.b16 %v582
      %v664 = vunpack.c.l.b16 %v583
      %v665 = vunpack.c.l.b16 %v584
      %v666 = vunpack.c.h.b16 %v584
      %v667 = vunpack.c.l.b16 %v585
      %v668 = vunpack.c.l.b16 %v586
      %v669 = vunpack.c.h.b16 %v586
      %v670 = vunpack.c.l.b16 %v587
      %v671 = vunpack.c.l.b16 %v588
      %v672 = vunpack.c.h.b16 %v588
      %v673 = vunpack.c.l.b16 %v589
      %v674 = vunpack.c.l.b16 %v590
      %v675 = vunpack.c.h.b16 %v590
      %v676 = vunpack.c.l.b16 %v591
      %v677 = vunpack.c.l.b16 %v592
      %v678 = vunpack.c.h.b16 %v592
      %v679 = vunpack.c.l.b16 %v593
      %v680 = vunpack.c.l.b16 %v594
      %v681 = vunpack.c.h.b16 %v594
      %v682 = vunpack.c.l.b16 %v595
      %v683 = vunpack.c.l.b16 %v596
      %v684 = vunpack.c.h.b16 %v596
      %v685 = vunpack.c.l.b16 %v597
      %v686 = vunpack.c.l.b16 %v598
      %v687 = vunpack.c.h.b16 %v598
      %v688 = vunpack.c.l.b16 %v599
      %v689 = vunpack.c.l.b16 %v600
      %v690 = vunpack.c.h.b16 %v600
      %v691 = vunpack.c.l.b16 %v601
      %v692 = vpack.c.b16 %v647, %v644
      %v693 = vpack.c.b16 %v648, %v645
      %v694 = vpack.c.b16 %v649, %v646
      %v695 = vpack.c.b16 %v653, %v650
      %v696 = vpack.c.b16 %v654, %v651
      %v697 = vpack.c.b16 %v655, %v652
      %v698 = vpack.c.b16 %v659, %v656
      %v699 = vpack.c.b16 %v660, %v657
      %v700 = vpack.c.b16 %v661, %v658
      %v701 = vpack.c.b16 %v665, %v662
      %v702 = vpack.c.b16 %v666, %v663
      %v703 = vpack.c.b16 %v667, %v664
      %v704 = vpack.c.b16 %v671, %v668
      %v705 = vpack.c.b16 %v672, %v669
      %v706 = vpack.c.b16 %v673, %v670
      %v707 = vpack.c.b16 %v677, %v674
      %v708 = vpack.c.b16 %v678, %v675
      %v709 = vpack.c.b16 %v679, %v676
      %v710 = vpack.c.b16 %v683, %v680
      %v711 = vpack.c.b16 %v684, %v681
      %v712 = vpack.c.b16 %v685, %v682
      %v713 = vpack.c.b16 %v689, %v686
      %v714 = vpack.c.b16 %v690, %v687
      %v715 = vpack.c.b16 %v691, %v688
      %740 = vmatprep.subr.bf16.mxu0 %v714
      %741 = vmatpush1.bf16.msra.mxu0 %v713
      %742 = vmatprep.subr.bf16.mxu0 %v711
      %743 = vmatpush1.bf16.msra.mxu0 %v710
      %744 = vmatprep.subr.bf16.mxu0 %v708
      %745 = vmatpush1.bf16.msra.mxu0 %v707
      %746 = vmatprep.subr.bf16.mxu0 %v705
      %747 = vmatpush1.bf16.msra.mxu0 %v704
      %748 = vmatprep.subr.bf16.mxu0 %v702
      %749 = vmatpush1.bf16.msra.mxu0 %v701
      %750 = vmatprep.subr.bf16.mxu0 %v699
      %751 = vmatpush1.bf16.msra.mxu0 %v698
      %752 = vmatprep.subr.bf16.mxu0 %v696
      %753 = vmatpush1.bf16.msra.mxu0 %v695
      %754 = vmatprep.subr.bf16.mxu0 %v693
      %755 = vmatpush1.bf16.msra.mxu0 %v692
      %756 = vmatprep.subr.bf16.mxu0 0
      %757 = vmatpush2.bf16.msra.mxu0 0
      %758 = vmatprep.subr.bf16.mxu0 0
      %759 = vmatpush2.bf16.msra.mxu0 0
      %760 = vmatprep.subr.bf16.mxu0 0
      %761 = vmatpush2.bf16.msra.mxu0 0
      %762 = vmatprep.subr.bf16.mxu0 0
      %763 = vmatpush2.bf16.msra.mxu0 0
      %764 = vmatprep.subr.bf16.mxu0 0
      %765 = vmatpush2.bf16.msra.mxu0 0
      %766 = vmatprep.subr.bf16.mxu0 0
      %767 = vmatpush2.bf16.msra.mxu0 0
      %768 = vmatprep.subr.bf16.mxu0 0
      %769 = vmatpush2.bf16.msra.mxu0 0
      %770 = vmatprep.subr.bf16.mxu0 0
      %771 = vmatpush2.bf16.msra.mxu0 0
      %772 = vmatprep.mubr.bf16.mxu0 0
      %773 = vmatmul.mubr.bf16.gmra.mxu0 %v608
      %v774 = vpop.f32.mrf.mxu0
      %v775 = vadd.f32 0.0, %v774
      %v776 = vpop.f32.mrf.mxu0
      %v777 = vadd.f32 0.0, %v776
      %v778 = vpop.f32.mrf.mxu0
      %v779 = vadd.f32 0.0, %v778
      %v780 = vpop.f32.mrf.mxu0
      %v781 = vadd.f32 0.0, %v780
      %782 = vmatprep.mubr.bf16.mxu0 0
      %783 = vmatmul.mubr.bf16.gmra.mxu0 %v609
      %v784 = vpop.f32.mrf.mxu0
      %v785 = vadd.f32 0.0, %v784
      %v786 = vpop.f32.mrf.mxu0
      %v787 = vadd.f32 0.0, %v786
      %v788 = vpop.f32.mrf.mxu0
      %v789 = vpop.f32.mrf.mxu0
      %790 = vdwg.mxu0
      %791 = vmatprep.subr.bf16.mxu0 0
      %792 = vmatpush1.bf16.msra.mxu0 %v715
      %793 = vmatprep.subr.bf16.mxu0 0
      %794 = vmatpush1.bf16.msra.mxu0 %v712
      %795 = vmatprep.subr.bf16.mxu0 0
      %796 = vmatpush1.bf16.msra.mxu0 %v709
      %797 = vmatprep.subr.bf16.mxu0 0
      %798 = vmatpush1.bf16.msra.mxu0 %v706
      %799 = vmatprep.subr.bf16.mxu0 0
      %800 = vmatpush1.bf16.msra.mxu0 %v703
      %801 = vmatprep.subr.bf16.mxu0 0
      %802 = vmatpush1.bf16.msra.mxu0 %v700
      %803 = vmatprep.subr.bf16.mxu0 0
      %804 = vmatpush1.bf16.msra.mxu0 %v697
      %805 = vmatprep.subr.bf16.mxu0 0
      %806 = vmatpush1.bf16.msra.mxu0 %v694
      %807 = vmatprep.subr.bf16.mxu0 0
      %808 = vmatpush2.bf16.msra.mxu0 0
      %809 = vmatprep.subr.bf16.mxu0 0
      %810 = vmatpush2.bf16.msra.mxu0 0
      %811 = vmatprep.subr.bf16.mxu0 0
      %812 = vmatpush2.bf16.msra.mxu0 0
      %813 = vmatprep.subr.bf16.mxu0 0
      %814 = vmatpush2.bf16.msra.mxu0 0
      %815 = vmatprep.subr.bf16.mxu0 0
      %816 = vmatpush2.bf16.msra.mxu0 0
      %817 = vmatprep.subr.bf16.mxu0 0
      %818 = vmatpush2.bf16.msra.mxu0 0
      %819 = vmatprep.subr.bf16.mxu0 0
      %820 = vmatpush2.bf16.msra.mxu0 0
      %821 = vmatprep.subr.bf16.mxu0 0
      %822 = vmatpush2.bf16.msra.mxu0 0
      %823 = vmatprep.mubr.bf16.mxu0 0
      %824 = vmatmul.mubr.bf16.gmra.mxu0 %v608
      %v825 = vpop.f32.mrf.mxu0
      %v826 = vadd.f32 0.0, %v825
      %v827 = vpop.f32.mrf.mxu0
      %v828 = vpop.f32.mrf.mxu0
      %v829 = vadd.f32 0.0, %v828
      %v830 = vpop.f32.mrf.mxu0
      %831 = vmatprep.mubr.bf16.mxu0 0
      %832 = vmatmul.mubr.bf16.gmra.mxu0 %v609
      %v833 = vpop.f32.mrf.mxu0
      %v834 = vadd.f32 0.0, %v833
      %v835 = vpop.f32.mrf.mxu0
      %v836 = vpop.f32.mrf.mxu0
      %v837 = vpop.f32.mrf.mxu0
      %838 = vdwg.mxu0
      %s839 = sadd.s32 %s237, 1
      %p840 = scmp.ge.s32.totalorder %s839, 0
      %p841 = scmp.lt.s32.totalorder %s839, 8
      %p842 = pnand %p840, %p841
      %p843 = pneg %p842
      // Predicated region
      $region49: #{single_up_forward.1} parent=31 // pred_check
        _
      $region50: #{single_up_forward.1} parent=31 // pred_check_branch
        %845 = sbr.rel (%p842) target = $region52
      $region51: #{single_up_forward.1} parent=31 // pred_region
        %s846 = smul.u32 %s839, 3
        %s847 = smul.addr %s846, 8
        %s848 = scalar_lea.vmem %s201, %s847
        %v849 = vld [vmem:[%s848] sm:$0xff]
        %v850 = vld [vmem:[%s848 + $0x8] sm:$0xff]
        %v851 = vld [vmem:[%s848 + $0x10] sm:$0xff]
        %v852 = vadd.f32 %v849, %v775
        %v853 = vadd.f32 %v850, %v777
        %v854 = vadd.f32 %v851, %v826
        %855 = vst [vmem:[%s848] sm:$0xff] %v852
        %856 = vst [vmem:[%s848 + $0x8] sm:$0xff] %v853
        %857 = vst [vmem:[%s848 + $0x10] sm:$0xff] %v854
      $region52: #{single_up_forward.1} parent=31 // pred_fallthru
        _
      // Predicated region
      $region53: #{single_up_forward.1} parent=31 // pred_check
        _
      $region54: #{single_up_forward.1} parent=31 // pred_check_branch
        %859 = sbr.rel (%p512) target = $region56
      $region55: #{single_up_forward.1} parent=31 // pred_region
        %s860 = smul.u32 %s237, 3
        %s861 = smul.addr %s860, 8
        %s862 = scalar_lea.vmem %s201, %s861
        %v863 = vld [vmem:[%s862] sm:$0xff]
        %v864 = vld [vmem:[%s862 + $0x8] sm:$0xff]
        %v865 = vld [vmem:[%s862 + $0x10] sm:$0xff]
        %v866 = vadd.f32 %v863, %v779
        %v867 = vadd.f32 %v864, %v781
        %v868 = vadd.f32 %v865, %v829
        %869 = vst [vmem:[%s862] sm:$0xff] %v866
        %870 = vst [vmem:[%s862 + $0x8] sm:$0xff] %v867
        %871 = vst [vmem:[%s862 + $0x10] sm:$0xff] %v868
      $region56: #{single_up_forward.1} parent=31 // pred_fallthru
        _
      // Predicated region
      $region57: #{single_up_forward.1} parent=31 // pred_check
        _
      $region58: #{single_up_forward.1} parent=31 // pred_check_branch
        %873 = sbr.rel (%p531) target = $region60
      $region59: #{single_up_forward.1} parent=31 // pred_region
        %s874 = smul.u32 %s528, 3
        %s875 = smul.addr %s874, 8
        %s876 = scalar_lea.vmem %s201, %s875
        %v877 = vld [vmem:[%s876] sm:$0xff]
        %v878 = vld [vmem:[%s876 + $0x8] sm:$0xff]
        %v879 = vld [vmem:[%s876 + $0x10] sm:$0xff]
        %v880 = vadd.f32 %v877, %v785
        %v881 = vadd.f32 %v878, %v787
        %v882 = vadd.f32 %v879, %v834
        %883 = vst [vmem:[%s876] sm:$0xff] %v880
        %884 = vst [vmem:[%s876 + $0x8] sm:$0xff] %v881
        %885 = vst [vmem:[%s876 + $0x10] sm:$0xff] %v882
      $region60: #{single_up_forward.1} parent=31 // pred_fallthru
        _
      %p886 = scmp.eq.s32.totalorder %s19, 4
      // Predicated region
      $region61: #{single_up_forward.1} parent=31 // pred_check
        %p887 = pneg %p886
      $region62: #{single_up_forward.1} parent=31 // pred_check_branch
        %889 = sbr.rel (%p887) target = $region64
      $region63: #{single_up_forward.1} parent=31 // pred_region
        %v890 = vld [vmem:[%s201] sm:$0xff]
        %v891 = vld [vmem:[%s201 + $0x8] sm:$0xff]
        %v892 = vld [vmem:[%s201 + $0x10] sm:$0xff]
        %v893 = vld [vmem:[%s201 + $0x18] sm:$0xff]
        %v894 = vld [vmem:[%s201 + $0x20] sm:$0xff]
        %v895 = vld [vmem:[%s201 + $0x28] sm:$0xff]
        %v896 = vld [vmem:[%s201 + $0x30] sm:$0xff]
        %v897 = vld [vmem:[%s201 + $0x38] sm:$0xff]
        %v898 = vld [vmem:[%s201 + $0x40] sm:$0xff]
        %v899 = vld [vmem:[%s201 + $0x48] sm:$0xff]
        %v900 = vld [vmem:[%s201 + $0x50] sm:$0xff]
        %v901 = vld [vmem:[%s201 + $0x58] sm:$0xff]
        %v902 = vld [vmem:[%s201 + $0x60] sm:$0xff]
        %v903 = vld [vmem:[%s201 + $0x68] sm:$0xff]
        %v904 = vld [vmem:[%s201 + $0x70] sm:$0xff]
        %v905 = vld [vmem:[%s201 + $0x78] sm:$0xff]
        %v906 = vld [vmem:[%s201 + $0x80] sm:$0xff]
        %v907 = vld [vmem:[%s201 + $0x88] sm:$0xff]
        %v908 = vld [vmem:[%s201 + $0x90] sm:$0xff]
        %v909 = vld [vmem:[%s201 + $0x98] sm:$0xff]
        %v910 = vld [vmem:[%s201 + $0xa0] sm:$0xff]
        %v911 = vld [vmem:[%s201 + $0xa8] sm:$0xff]
        %v912 = vld [vmem:[%s201 + $0xb0] sm:$0xff]
        %v913 = vld [vmem:[%s201 + $0xb8] sm:$0xff]
        %v914 = vmax.f32 %v890, 0.0
        %v915 = vmax.f32 %v891, 0.0
        %v916 = vmax.f32 %v892, 0.0
        %v917 = vmax.f32 %v893, 0.0
        %v918 = vmax.f32 %v894, 0.0
        %v919 = vmax.f32 %v895, 0.0
        %v920 = vmax.f32 %v896, 0.0
        %v921 = vmax.f32 %v897, 0.0
        %v922 = vmax.f32 %v898, 0.0
        %v923 = vmax.f32 %v899, 0.0
        %v924 = vmax.f32 %v900, 0.0
        %v925 = vmax.f32 %v901, 0.0
        %v926 = vmax.f32 %v902, 0.0
        %v927 = vmax.f32 %v903, 0.0
        %v928 = vmax.f32 %v904, 0.0
        %v929 = vmax.f32 %v905, 0.0
        %v930 = vmax.f32 %v906, 0.0
        %v931 = vmax.f32 %v907, 0.0
        %v932 = vmax.f32 %v908, 0.0
        %v933 = vmax.f32 %v909, 0.0
        %v934 = vmax.f32 %v910, 0.0
        %v935 = vmax.f32 %v911, 0.0
        %v936 = vmax.f32 %v912, 0.0
        %v937 = vmax.f32 %v913, 0.0
        %938 = vst [vmem:[%s201] sm:$0xff] %v914
        %939 = vst [vmem:[%s201 + $0x8] sm:$0xff] %v915
        %940 = vst [vmem:[%s201 + $0x10] sm:$0xff] %v916
        %941 = vst [vmem:[%s201 + $0x18] sm:$0xff] %v917
        %942 = vst [vmem:[%s201 + $0x20] sm:$0xff] %v918
        %943 = vst [vmem:[%s201 + $0x28] sm:$0xff] %v919
        %944 = vst [vmem:[%s201 + $0x30] sm:$0xff] %v920
        %945 = vst [vmem:[%s201 + $0x38] sm:$0xff] %v921
        %946 = vst [vmem:[%s201 + $0x40] sm:$0xff] %v922
        %947 = vst [vmem:[%s201 + $0x48] sm:$0xff] %v923
        %948 = vst [vmem:[%s201 + $0x50] sm:$0xff] %v924
        %949 = vst [vmem:[%s201 + $0x58] sm:$0xff] %v925
        %950 = vst [vmem:[%s201 + $0x60] sm:$0xff] %v926
        %951 = vst [vmem:[%s201 + $0x68] sm:$0xff] %v927
        %952 = vst [vmem:[%s201 + $0x70] sm:$0xff] %v928
        %953 = vst [vmem:[%s201 + $0x78] sm:$0xff] %v929
        %954 = vst [vmem:[%s201 + $0x80] sm:$0xff] %v930
        %955 = vst [vmem:[%s201 + $0x88] sm:$0xff] %v931
        %956 = vst [vmem:[%s201 + $0x90] sm:$0xff] %v932
        %957 = vst [vmem:[%s201 + $0x98] sm:$0xff] %v933
        %958 = vst [vmem:[%s201 + $0xa0] sm:$0xff] %v934
        %959 = vst [vmem:[%s201 + $0xa8] sm:$0xff] %v935
        %960 = vst [vmem:[%s201 + $0xb0] sm:$0xff] %v936
        %961 = vst [vmem:[%s201 + $0xb8] sm:$0xff] %v937
      $region64: #{single_up_forward.1} parent=31 // pred_fallthru
        _
      %p962 = scmp.lt.s32.totalorder %s18, 1
      %s963 = scalar_select %p962, %s18, 1
      %s964 = smul.addr %s963, 24
      %s965 = smul.addr %s964, 8
      %s966 = scalar_lea.vmem %s3, %s965
      // Predicated region
      $region65: #{single_up_forward.1} parent=31 // pred_check
        %p967 = pneg %p114
      $region66: #{single_up_forward.1} parent=31 // pred_check_branch
        %969 = sbr.rel (%p967) target = $region68
      $region67: #{single_up_forward.1} parent=31 // pred_region
        _
      $region68: #{single_up_forward.1} parent=31 // pred_fallthru
        _
    $region32: #{single_up_forward.1} parent=5 // pred_fallthru
      _
    %p970 = scmp.le.s32.totalorder 2, %s9
    // Predicated region
    $region69: #{single_up_forward.1} parent=5 // pred_check
      %p971 = pneg %p970
    $region70: #{single_up_forward.1} parent=5 // pred_check_branch
      %973 = sbr.rel (%p971) target = $region72
    $region71: #{single_up_forward.1} parent=5 // pred_region
      %s974 = ssub.s32 %s9, 2
      // Predicated region
      $region73: #{single_up_forward.1} parent=71 // pred_check
        %p975 = pneg %p120
      $region74: #{single_up_forward.1} parent=71 // pred_check_branch
        %977 = sbr.rel (%p975) target = $region76
      $region75: #{single_up_forward.1} parent=71 // pred_region
        %p978 = scmp.lt.s32.totalorder %s20, 1
        %s979 = scalar_select %p978, %s20, 1
        %s980 = smul.addr %s979, 24
        %s981 = smul.addr %s980, 8
        %s982 = scalar_lea.vmem %s3, %s981
      $region76: #{single_up_forward.1} parent=71 // pred_fallthru
        _
    $region72: #{single_up_forward.1} parent=5 // pred_fallthru
      _
  $region6: #{single_up_forward.1} parent=0 // loop_footer
    %s13 = sadd.s32 1, %s9
  $region7: #{single_up_forward.1} parent=0 // loop_footer_branch
    %8 = sbr.rel target = $region3
  $region8: #{single_up_forward.1} parent=0 // loop_exit
    _

</llo_original>
